<compile_context>
chip_gen: v7x
topology: tpu7x:2x2x1
jax: 0.10.0
libtpu: 0.0.40
codegen_flags: <defaults>
</compile_context>

<pallas_src>
import jax
import jax.numpy as jnp
from jax.experimental import pallas as pl
from jax.experimental.pallas import tpu as pltpu


def _round_up(v, m):
    return ((v + m - 1) // m) * m


def _linear_kernel(x_ref, wt_ref, b_ref, o_ref, acc_ref):
    # x_ref: (TB, TK)  wt_ref: (TK, C)  b_ref: (1, C)  o_ref: (TB, C)  acc: (TB, C) f32
    k = pl.program_id(1)

    @pl.when(k == 0)
    def _():
        acc_ref[...] = jnp.zeros_like(acc_ref)

    acc_ref[...] += jnp.dot(x_ref[...], wt_ref[...],
                            preferred_element_type=jnp.float32)

    @pl.when(k == pl.num_programs(1) - 1)
    def _():
        o_ref[...] = (acc_ref[...] + b_ref[...]).astype(o_ref.dtype)


def _choose_tiles(B, D, C, vmem_budget_bytes):
    """Pick (TB, TK) so the double-buffered working set fits the VMEM budget."""
    c_l = _round_up(C, 128)  # lane-padded logits width as held in VMEM

    # ---- K tile: keep the (double-buffered, lane-padded) weight tile within ~1/3
    # of the budget; prefer multiples of 256 (MXU K width on v6e/v7x) that divide D
    # so a ragged K block never feeds the accumulator.
    max_tk = max(128, (vmem_budget_bytes // 3) // (2 * c_l * 4))
    if D <= max_tk:
        tk = D
    else:
        tk = 0
        for step in (256, 128):
            cand = (max_tk // step) * step
            while cand >= step:
                if D % cand == 0:
                    tk = cand
                    break
                cand -= step
            if tk:
                break
        if tk == 0:
            # TODO(synk): D has no 128-aligned divisor <= budget; fall back to a
            # single resident weight tile and let vmem_limit_bytes grow.
            tk = D

    # ---- batch tile: big enough to amortize per-step overhead (>= ~2 MiB of x per
    # step) but within the remaining VMEM budget.
    tk_l = _round_up(tk, 128)
    tb_target = max(256, (2 * 1024 * 1024) // max(1, 4 * tk))
    fixed = (2 * _round_up(tk, 8) * c_l + 2 * 8 * c_l) * 4       # weight + bias (dbuf)
    per_row = (2 * tk_l + 3 * c_l) * 4                            # x(dbuf)+out(dbuf)+acc
    tb_cap = max(8, (vmem_budget_bytes - fixed) // per_row)
    tb = min(tb_target, tb_cap, _round_up(B, 8))

    # keep >= 2 batch steps when the batch is large enough (v7x has 2 TensorCores)
    half_b = _round_up((B + 1) // 2, 8)
    if half_b >= 1024:
        tb = min(tb, half_b)

    tb = max(8, _round_up(tb, 8))
    return tb, tk


def logistic_regression_forward(x, weight, bias, *, vmem_budget_bytes=24 * 1024 * 1024):
    """Forward pass of LogisticRegression: x @ weight.T + bias.

    x:      (B, D) float32
    weight: (C, D) float32   (PyTorch nn.Linear layout)
    bias:   (C,)   float32
    returns (B, C) float32
    """
    B, D = x.shape
    C, D2 = weight.shape
    assert D == D2, "weight inner dim must match x feature dim"

    # One-time, tiny parameter prep: (D, C) weight and 2-D bias for broadcasting.
    wt = weight.T                      # (D, C)
    b2 = bias.reshape(1, C)            # (1, C)

    TB, TK = _choose_tiles(B, D, C, vmem_budget_bytes)
    assert D % TK == 0, "K tile must divide D (guaranteed by _choose_tiles)"
    grid = (pl.cdiv(B, TB), D // TK)

    # VMEM actually needed (lane/sublane-padded, double-buffered) + headroom.
    tk_l = _round_up(TK, 128)
    c_l = _round_up(C, 128)
    vmem_need = 4 * (2 * TB * tk_l            # x, double buffered
                     + 2 * TB * c_l           # out, double buffered
                     + TB * c_l               # f32 accumulator scratch
                     + 2 * _round_up(TK, 8) * c_l   # weight tile, double buffered
                     + 2 * 8 * c_l)           # bias tile
    vmem_limit = int(max(16 * 1024 * 1024, vmem_need + 2 * 1024 * 1024))

    cost = pl.CostEstimate(
        flops=2 * B * D * C,
        transcendentals=0,
        bytes_accessed=4 * (B * D + D * C + B * C),
    )

    out = pl.pallas_call(
        _linear_kernel,
        out_shape=jax.ShapeDtypeStruct((B, C), x.dtype),
        grid_spec=pltpu.PrefetchScalarGridSpec(
            num_scalar_prefetch=0,
            grid=grid,
            in_specs=[
                pl.BlockSpec((TB, TK), lambda i, k: (i, k)),   # x: streamed per (b, k) tile
                pl.BlockSpec((TK, C), lambda i, k: (k, 0)),    # weight: per-k tile, VMEM-resident across b
                pl.BlockSpec((1, C), lambda i, k: (0, 0)),     # bias: VMEM-resident
            ],
            out_specs=pl.BlockSpec((TB, C), lambda i, k: (i, 0)),
            scratch_shapes=[pltpu.VMEM((TB, C), jnp.float32)],
        ),
        compiler_params=pltpu.CompilerParams(
            dimension_semantics=("parallel", "arbitrary"),
            vmem_limit_bytes=vmem_limit,
        ),
        cost_estimate=cost,
    )(x, wt, b2)

    return out


if __name__ == "__main__":
    # Small shapes consistent with the module: input_size=32, num_classes=10, batch=8
    batch, input_size, num_classes = 8, 32, 10

    key = jax.random.PRNGKey(0)
    kx, kw, kb = jax.random.split(key, 3)

    x = jax.random.normal(kx, (batch, input_size), dtype=jnp.float32)
    # Mimic nn.Linear's uniform(-1/sqrt(D), 1/sqrt(D)) init, deterministic.
    bound = 1.0 / (input_size ** 0.5)
    weight = jax.random.uniform(kw, (num_classes, input_size),
                                minval=-bound, maxval=bound, dtype=jnp.float32)
    bias = jax.random.uniform(kb, (num_classes,),
                              minval=-bound, maxval=bound, dtype=jnp.float32)

    out = logistic_regression_forward(x, weight, bias)
    out = jax.block_until_ready(out)

    # Reference check in plain JAX
    ref = x @ weight.T + bias
    assert out.shape == (batch, num_classes)
    assert jnp.allclose(out, ref, atol=1e-5, rtol=1e-5)

    print("KERNEL_OK")
</pallas_src>

<mosaic_0001>
module attributes {stable_mosaic.version = 11 : i64} {
  func.func @_linear_kernel(%arg0: i32, %arg1: i32, %arg2: memref<8x32xf32, #tpu.memory_space<vmem>>, %arg3: memref<32x10xf32, #tpu.memory_space<vmem>>, %arg4: memref<1x10xf32, #tpu.memory_space<vmem>>, %arg5: memref<8x10xf32, #tpu.memory_space<vmem>>, %arg6: memref<8x10xf32, #tpu.memory_space<vmem>>) attributes {dimension_semantics = [#tpu.dimension_semantics<parallel>, #tpu.dimension_semantics<arbitrary>], iteration_bounds = array<i64: 1, 1>, scalar_prefetch = 0 : i64, scratch_operands = 1 : i64, tpu.core_type = #tpu.core_type<tc>, window_params = [{transform_indices = @transform_0, window_bounds = array<i64: 8, 32>}, {transform_indices = @transform_1, window_bounds = array<i64: 32, 10>}, {pipeline_mode = #tpu.pipeline_mode<synchronous>, transform_indices = @transform_2, window_bounds = array<i64: 1, 10>}, {transform_indices = @transform_3, window_bounds = array<i64: 8, 10>}]} {
    %c0_i32 = arith.constant 0 : i32
    %0 = arith.cmpi eq, %arg1, %c0_i32 : i32
    %1 = arith.extui %0 : i1 to i32
    %c0_i32_0 = arith.constant 0 : i32
    %2 = arith.cmpi ne, %1, %c0_i32_0 : i32
    scf.if %2 {
      %cst_10 = arith.constant 0.000000e+00 : f32
      %12 = vector.broadcast %cst_10 : f32 to vector<8x10xf32>
      %c0_11 = arith.constant 0 : index
      %c0_12 = arith.constant 0 : index
      %13 = vector.load %arg6[%c0_11, %c0_12] : memref<8x10xf32, #tpu.memory_space<vmem>>, vector<8x10xf32>
      tpu.vector_store %arg6[%c0_11, %c0_12], %12 {strides = array<i32>} : memref<8x10xf32, #tpu.memory_space<vmem>>, vector<8x10xf32>,
    } else {
    }
    %c0 = arith.constant 0 : index
    %c0_1 = arith.constant 0 : index
    %3 = vector.load %arg6[%c0, %c0_1] : memref<8x10xf32, #tpu.memory_space<vmem>>, vector<8x10xf32>
    %c0_2 = arith.constant 0 : index
    %c0_3 = arith.constant 0 : index
    %4 = vector.load %arg2[%c0_2, %c0_3] : memref<8x32xf32, #tpu.memory_space<vmem>>, vector<8x32xf32>
    %c0_4 = arith.constant 0 : index
    %c0_5 = arith.constant 0 : index
    %5 = vector.load %arg3[%c0_4, %c0_5] : memref<32x10xf32, #tpu.memory_space<vmem>>, vector<32x10xf32>
    %cst = arith.constant dense<0.000000e+00> : vector<8x10xf32>
    %6 = tpu.matmul %4, %5, %cst {dimension_numbers = #tpu.dot_dimension_numbers<[1], [0], [0], [1], [0, 0, 1, 1], [], []>} : vector<8x32xf32>, vector<32x10xf32>, vector<8x10xf32> -> vector<8x10xf32>
    %7 = arith.addf %3, %6 : vector<8x10xf32>
    %c0_6 = arith.constant 0 : index
    %c0_7 = arith.constant 0 : index
    %8 = vector.load %arg6[%c0_6, %c0_7] : memref<8x10xf32, #tpu.memory_space<vmem>>, vector<8x10xf32>
    tpu.vector_store %arg6[%c0_6, %c0_7], %7 {strides = array<i32>} : memref<8x10xf32, #tpu.memory_space<vmem>>, vector<8x10xf32>,
    %c0_i32_8 = arith.constant 0 : i32
    %9 = arith.cmpi eq, %arg1, %c0_i32_8 : i32
    %10 = arith.extui %9 : i1 to i32
    %c0_i32_9 = arith.constant 0 : i32
    %11 = arith.cmpi ne, %10, %c0_i32_9 : i32
    scf.if %11 {
      %c0_10 = arith.constant 0 : index
      %c0_11 = arith.constant 0 : index
      %12 = vector.load %arg6[%c0_10, %c0_11] : memref<8x10xf32, #tpu.memory_space<vmem>>, vector<8x10xf32>
      %c0_12 = arith.constant 0 : index
      %c0_13 = arith.constant 0 : index
      %13 = vector.load %arg4[%c0_12, %c0_13] : memref<1x10xf32, #tpu.memory_space<vmem>>, vector<1x10xf32>
      %14 = vector.broadcast %13 : vector<1x10xf32> to vector<8x10xf32>
      %15 = arith.addf %12, %14 : vector<8x10xf32>
      %c0_14 = arith.constant 0 : index
      %c0_15 = arith.constant 0 : index
      %16 = vector.load %arg5[%c0_14, %c0_15] : memref<8x10xf32, #tpu.memory_space<vmem>>, vector<8x10xf32>
      tpu.vector_store %arg5[%c0_14, %c0_15], %15 {strides = array<i32>} : memref<8x10xf32, #tpu.memory_space<vmem>>, vector<8x10xf32>,
    } else {
    }
    return
  }
  func.func @transform_0(%arg0: i32, %arg1: i32) -> (i32, i32) {
    %c0_i32 = arith.constant 0 : i32
    return %arg0, %arg1 : i32, i32
  }
  func.func @transform_1(%arg0: i32, %arg1: i32) -> (i32, i32) {
    %c0_i32 = arith.constant 0 : i32
    %c0_i32_0 = arith.constant 0 : i32
    return %arg1, %c0_i32 : i32, i32
  }
  func.func @transform_2(%arg0: i32, %arg1: i32) -> (i32, i32) {
    %c0_i32 = arith.constant 0 : i32
    %c0_i32_0 = arith.constant 0 : i32
    %c0_i32_1 = arith.constant 0 : i32
    return %c0_i32, %c0_i32_0 : i32, i32
  }
  func.func @transform_3(%arg0: i32, %arg1: i32) -> (i32, i32) {
    %c0_i32 = arith.constant 0 : i32
    %c0_i32_0 = arith.constant 0 : i32
    return %arg0, %c0_i32 : i32, i32
  }
}

</mosaic_0001>

<llo_original>
// kernel: tpu_custom_call.1
$region0: #{tpu_custom_call.1}
  #allocation0 [shape = 'u32[]', space=smem, size = 0x4, offset = 0x4, fixed_abs, tag = 'smem constant byte address 0x4 - core index']
  #allocation1 [shape = 'u32[144,128]{1,0:T(1,128)}', space=vmem, size = 0x12000, scoped, tag = 'internal scratch']
  #allocation2 [shape = 'f32[8,10]{1,0:T(8,128)}', space=vmem, size = 0x1000, scoped, tag = 'scratch operand']
  %s0 = inlined_call_operand.vmem [shape: f32[8,32], index: 0, kind: input, shape index: {}]
  %s1 = inlined_call_operand.vmem [shape: f32[32,10], index: 1, kind: input, shape index: {}]
  %s2 = inlined_call_operand.vmem [shape: f32[1,10], index: 2, kind: input, shape index: {}]
  %s3 = inlined_call_operand.hbm [shape: f32[8,10], index: 3, kind: output, shape index: {}]
  %s4 = sld [smem:[#allocation0]]
  $region30: #{tpu_custom_call.1} parent=0
    _
  %s6 = ssub.s32 1, %s4
  %s7 = scalar_select 0, %s6, %s4
  $region1: #{tpu_custom_call.1} parent=0
    #allocation3 [shape = 'u8[4096]{0}', space=vmem, size = 0x1000, scoped, tag = 'output window, operand 0, single buffered']
    #allocation4 [shape = 's32[1]{0}', space=sflag, size = 0x4, scoped, tag = 'scoped memory for tpu_custom_call.1']
    %8 = vsyncpa [#allocation4], 0
    // Predicated region
    $region2: #{tpu_custom_call.1} parent=1 // pred_check
      _
    $region3: #{tpu_custom_call.1} parent=1 // pred_check_branch
      %10 = sbr.rel (0) target = $region5
    $region4: #{tpu_custom_call.1} parent=1 // pred_region
      _
    $region5: #{tpu_custom_call.1} parent=1 // pred_fallthru
      _
    // Predicated region
    $region6: #{tpu_custom_call.1} parent=1 // pred_check
      _
    $region7: #{tpu_custom_call.1} parent=1 // pred_check_branch
      %12 = sbr.rel (0) target = $region9
    $region8: #{tpu_custom_call.1} parent=1 // pred_region
      _
    $region9: #{tpu_custom_call.1} parent=1 // pred_fallthru
      _
    // Predicated region
    $region10: #{tpu_custom_call.1} parent=1 // pred_check
      _
    $region11: #{tpu_custom_call.1} parent=1 // pred_check_branch
      %14 = sbr.rel (0) target = $region13
    $region12: #{tpu_custom_call.1} parent=1 // pred_region
      _
    $region13: #{tpu_custom_call.1} parent=1 // pred_fallthru
      _
    %p15 = scmp.eq.s32.totalorder 0, 0
    // Predicated region
    $region14: #{tpu_custom_call.1} parent=1 // pred_check
      %p16 = pneg %p15
    $region15: #{tpu_custom_call.1} parent=1 // pred_check_branch
      %18 = sbr.rel (%p16) target = $region17
    $region16: #{tpu_custom_call.1} parent=1 // pred_region
      %vm19 = vcmask 80896
      %20 = vst.msk [vmem:[#allocation2] sm:$0xff] %vm19, 0.0
    $region17: #{tpu_custom_call.1} parent=1 // pred_fallthru
      _
    %v21 = vld [vmem:[#allocation2] sm:$0xff]
    %v22 = vld [vmem:[%s0] sm:$0xff]
    %v23 = vld [vmem:[%s1] sm:$0xff]
    %v24 = vld [vmem:[%s1 + $0x8] sm:$0xff]
    %v25 = vld [vmem:[%s1 + $0x10] sm:$0xff]
    %v26 = vld [vmem:[%s1 + $0x18] sm:$0xff]
    %vm27 = vcmask 261120
    %v29 = vsel %vm27, %v22, 0
    %31 = vmatprep.subr.mxu0 0.0
    %32 = vmatpush1.msra.mxu0 %v23
    %33 = vmatprep.subr.mxu0 0.0
    %34 = vmatpush1.msra.mxu0 %v24
    %35 = vmatprep.subr.mxu0 0.0
    %36 = vmatpush1.msra.mxu0 %v25
    %37 = vmatprep.subr.mxu0 0.0
    %38 = vmatpush1.msra.mxu0 %v26
    %39 = vmatprep.subr.mxu0 0.0
    %40 = vmatpush1.msra.mxu0 0.0
    %41 = vmatprep.subr.mxu0 0.0
    %42 = vmatpush1.msra.mxu0 0.0
    %43 = vmatprep.subr.mxu0 0.0
    %44 = vmatpush1.msra.mxu0 0.0
    %45 = vmatprep.subr.mxu0 0.0
    %46 = vmatpush1.msra.mxu0 0.0
    %47 = vmatprep.subr.mxu0 0.0
    %48 = vmatpush1.msra.mxu0 0.0
    %49 = vmatprep.subr.mxu0 0.0
    %50 = vmatpush1.msra.mxu0 0.0
    %51 = vmatprep.subr.mxu0 0.0
    %52 = vmatpush1.msra.mxu0 0.0
    %53 = vmatprep.subr.mxu0 0.0
    %54 = vmatpush1.msra.mxu0 0.0
    %55 = vmatprep.subr.mxu0 0.0
    %56 = vmatpush1.msra.mxu0 0.0
    %57 = vmatprep.subr.mxu0 0.0
    %58 = vmatpush1.msra.mxu0 0.0
    %59 = vmatprep.subr.mxu0 0.0
    %60 = vmatpush1.msra.mxu0 0.0
    %61 = vmatprep.subr.mxu0 0.0
    %62 = vmatpush1.msra.mxu0 0.0
    %63 = vmatprep.subr.mxu0 0.0
    %64 = vmatpush1.msra.mxu0 0.0
    %65 = vmatprep.subr.mxu0 0.0
    %66 = vmatpush1.msra.mxu0 0.0
    %67 = vmatprep.subr.mxu0 0.0
    %68 = vmatpush1.msra.mxu0 0.0
    %69 = vmatprep.subr.mxu0 0.0
    %70 = vmatpush1.msra.mxu0 0.0
    %71 = vmatprep.subr.mxu0 0.0
    %72 = vmatpush1.msra.mxu0 0.0
    %73 = vmatprep.subr.mxu0 0.0
    %74 = vmatpush1.msra.mxu0 0.0
    %75 = vmatprep.subr.mxu0 0.0
    %76 = vmatpush1.msra.mxu0 0.0
    %77 = vmatprep.subr.mxu0 0.0
    %78 = vmatpush1.msra.mxu0 0.0
    %79 = vmatprep.subr.mxu0 0.0
    %80 = vmatpush1.msra.mxu0 0.0
    %81 = vmatprep.subr.mxu0 0.0
    %82 = vmatpush1.msra.mxu0 0.0
    %83 = vmatprep.subr.mxu0 0.0
    %84 = vmatpush1.msra.mxu0 0.0
    %85 = vmatprep.subr.mxu0 0.0
    %86 = vmatpush1.msra.mxu0 0.0
    %87 = vmatprep.subr.mxu0 0.0
    %88 = vmatpush1.msra.mxu0 0.0
    %89 = vmatprep.subr.mxu0 0.0
    %90 = vmatpush1.msra.mxu0 0.0
    %91 = vmatprep.subr.mxu0 0.0
    %92 = vmatpush1.msra.mxu0 0.0
    %93 = vmatprep.subr.mxu0 0.0
    %94 = vmatpush1.msra.mxu0 0.0
    %95 = vmatprep.mubr.f32.mxu0 0.0
    %96 = vmatmul.mubr.f32.gmra.mrb[0].mxu0 %v29
    %v97 = vpop.f32.mrb[0].mxu0
    %v98 = vadd.f32 0.0, %v97
    %v99 = vpop.f32.mrb[0].mxu0
    %100 = vdwg.mxu0
    %v101 = vadd.f32 %v21, %v98
    %vm102 = vcmask 80896
    %103 = vst.msk [vmem:[#allocation2] sm:$0xff] %vm102, %v101
    // Predicated region
    $region18: #{tpu_custom_call.1} parent=1 // pred_check
      %p104 = pneg %p15
    $region19: #{tpu_custom_call.1} parent=1 // pred_check_branch
      %106 = sbr.rel (%p104) target = $region21
    $region20: #{tpu_custom_call.1} parent=1 // pred_region
      %v107 = vld [vmem:[#allocation2] sm:$0xff]
      %v108 = vld [vmem:[%s2] sm:$0x1]
      %v110 = vlaneseq
      %v111 = vshrl.u32 %v110, 7
      %v112 = vsub.s32 0, %v111
      %v113 = vrot.slane %v108, %v112
      %v115 = vadd.f32 %v107, %v113
      %116 = vst.msk [vmem:[#allocation3] sm:$0xff] %vm102, %v115
    $region21: #{tpu_custom_call.1} parent=1 // pred_fallthru
      _
    // Predicated region
    $region22: #{tpu_custom_call.1} parent=1 // pred_check
      _
    $region23: #{tpu_custom_call.1} parent=1 // pred_check_branch
      %118 = sbr.rel (0) target = $region25
    $region24: #{tpu_custom_call.1} parent=1 // pred_region
      %s120 = ssub.s32 128, 128
      %121 = vsyncadd [#allocation4], %s120
      %s123 = sshll.u32 [#allocation3], 4
      %s124 = int_to_ptr.vmem [resolvable:$true] %s123
      %126 = dma.vmem_to_hbm [thread:$0]  %s124, 128, %s3, [#allocation4]
    $region25: #{tpu_custom_call.1} parent=1 // pred_fallthru
      _
    // Predicated region
    $region26: #{tpu_custom_call.1} parent=1 // pred_check
      _
    $region27: #{tpu_custom_call.1} parent=1 // pred_check_branch
      %128 = sbr.rel (0) target = $region29
    $region28: #{tpu_custom_call.1} parent=1 // pred_region
      %129 = dma.done [#allocation4], 128
    $region29: #{tpu_custom_call.1} parent=1 // pred_fallthru
      _
    %130 = vsyncpa [#allocation4], 1

</llo_original>
